<compile_context>
chip_gen: v6e
topology: v6e:2x2x1
jax: 0.10.0
libtpu: 0.0.40
codegen_flags: <defaults>
</compile_context>

<pallas_src>
import functools

import jax
import jax.numpy as jnp
from jax.experimental import pallas as pl
from jax.experimental.pallas import tpu as pltpu

LANE = 128
SUBLANE = 8
_VMEM_LIMIT_BYTES = 64 * 1024 * 1024  # explicit scoped-VMEM limit (portable v5e/v6e/v7x)


def _round_up(x, m):
    return (x + m - 1) // m * m


def _pick_tile_hw(hw, cin_p, c_p, budget_bytes=32 * 1024 * 1024, max_tile=2048):
    """Largest H*W tile (rows) keeping double-buffered x/out tiles + resident
    weights + f32 intermediates within a VMEM budget that fits all TPU gens."""
    per_row = 2 * (cin_p * 2 + c_p * 4) + 4 * c_p * 4        # dbl-buf bf16 x + f32 out + y/z temps
    fixed = 2 * (cin_p * c_p * 2 + c_p * c_p * 2) + 16 * c_p * 4
    tile = max((budget_bytes - fixed) // per_row, SUBLANE)
    tile = int(tile) // SUBLANE * SUBLANE
    tile = max(min(tile, max_tile), SUBLANE)
    hw8 = _round_up(hw, SUBLANE)
    return hw8 if hw8 <= tile else tile


def filter_gen_kernel(x_ref, wg_ref, bg_ref, br_ref, bns_ref, bnb_ref,
                      fs_ref, bc_ref, acc_ref, *, inv_hw):
    """Pass 1: GAP over H*W (tiled reduction) + filter_gen_conv + constant folding."""
    t = pl.program_id(1)

    @pl.when(t == 0)
    def _():
        acc_ref[...] = jnp.zeros_like(acc_ref)

    x = x_ref[0].astype(jnp.float32)                       # (TILE_HW, Cin_p)
    acc_ref[...] += jnp.sum(x, axis=0, keepdims=True)      # partial spatial sum

    @pl.when(t == pl.num_programs(1) - 1)
    def _():
        gap = acc_ref[...] * inv_hw                        # (1, Cin_p) true mean over H*W
        filt = jnp.dot(gap, wg_ref[...],
                       preferred_element_type=jnp.float32) + bg_ref[...]   # (1, C_p)
        fs = filt * bns_ref[...]                           # filt * BN scale
        fs_ref[0] = fs
        bc_ref[0] = br_ref[...] * fs + bnb_ref[...]        # folded reduce-bias + BN shift


def dcm_main_kernel(x_ref, fs_ref, bc_ref, wr_ref, wf_ref, bf_ref, o_ref):
    """Pass 2: per (batch, hw-tile): relu((x@wr)*filt_s + bias_comb) @ wf + bf."""
    x = x_ref[0]                                           # (TILE_HW, Cin_p) bf16
    y = jnp.dot(x, wr_ref[...], preferred_element_type=jnp.float32)       # f32
    z = jnp.maximum(y * fs_ref[0] + bc_ref[0], 0.0)                        # f32 VPU chain
    out = jnp.dot(z.astype(jnp.bfloat16), wf_ref[...],
                  preferred_element_type=jnp.float32) + bf_ref[...]
    o_ref[0] = out.astype(o_ref.dtype)


def dcm_forward(x_nchw, params, *, tile_hw=None):
    b, cin, h, w = x_nchw.shape
    c = params["wr"].shape[1]
    hw = h * w

    cin_p = _round_up(cin, LANE)
    c_p = _round_up(c, LANE)
    tile = tile_hw if tile_hw is not None else _pick_tile_hw(hw, cin_p, c_p)
    hw_p = _round_up(hw, tile)
    n_t = hw_p // tile

    # NCHW -> (B, H*W, Cin); zero-pad spatial/channel; activations in bf16 (halves DMA).
    x_flat = jnp.transpose(x_nchw, (0, 2, 3, 1)).reshape(b, hw, cin)
    x_bf16 = jnp.pad(x_flat, ((0, 0), (0, hw_p - hw), (0, cin_p - cin))
                     ).astype(jnp.bfloat16)

    def pad2(a, rows, cols):
        return jnp.pad(a, ((0, rows - a.shape[0]), (0, cols - a.shape[1])))

    wg = pad2(params["wg"], cin_p, c_p).astype(jnp.float32)   # tiny gemv stays f32
    wr = pad2(params["wr"], cin_p, c_p).astype(jnp.bfloat16)
    wf = pad2(params["wf"], c_p, c_p).astype(jnp.bfloat16)
    bg = pad2(params["bg"], 1, c_p).astype(jnp.float32)
    br = pad2(params["br"], 1, c_p).astype(jnp.float32)
    bfu = pad2(params["bf"], 1, c_p).astype(jnp.float32)
    bns = pad2(params["bn_scale"], 1, c_p).astype(jnp.float32)
    bnb = pad2(params["bn_shift"], 1, c_p).astype(jnp.float32)

    vec_spec = pl.BlockSpec((1, c_p), lambda i, t: (0, 0))

    # Pass 1: per-batch generated-filter scale/bias (hoisted out of the spatial loop).
    filt_s, bias_comb = pl.pallas_call(
        functools.partial(filter_gen_kernel, inv_hw=1.0 / hw),
        out_shape=(jax.ShapeDtypeStruct((b, 1, c_p), jnp.float32),
                   jax.ShapeDtypeStruct((b, 1, c_p), jnp.float32)),
        grid=(b, n_t),
        in_specs=[
            pl.BlockSpec((1, tile, cin_p), lambda i, t: (i, t, 0)),  # x tile
            pl.BlockSpec((cin_p, c_p), lambda i, t: (0, 0)),         # wg
            vec_spec,   # bg
            vec_spec,   # br
            vec_spec,   # bn_scale
            vec_spec,   # bn_shift
        ],
        out_specs=(pl.BlockSpec((1, 1, c_p), lambda i, t: (i, 0, 0)),
                   pl.BlockSpec((1, 1, c_p), lambda i, t: (i, 0, 0))),
        scratch_shapes=[pltpu.VMEM((1, cin_p), jnp.float32)],
        compiler_params=pltpu.CompilerParams(
            dimension_semantics=("parallel", "arbitrary"),
            vmem_limit_bytes=_VMEM_LIMIT_BYTES),
    )(x_bf16, wg, bg, br, bns, bnb)

    # Pass 2: spatially tiled main loop (both grid axes independent -> parallel).
    out_pad = pl.pallas_call(
        dcm_main_kernel,
        out_shape=jax.ShapeDtypeStruct((b, hw_p, c_p), jnp.float32),
        grid=(b, n_t),
        in_specs=[
            pl.BlockSpec((1, tile, cin_p), lambda i, t: (i, t, 0)),  # x tile
            pl.BlockSpec((1, 1, c_p), lambda i, t: (i, 0, 0)),       # filt_s (per batch)
            pl.BlockSpec((1, 1, c_p), lambda i, t: (i, 0, 0)),       # bias_comb
            pl.BlockSpec((cin_p, c_p), lambda i, t: (0, 0)),         # wr
            pl.BlockSpec((c_p, c_p), lambda i, t: (0, 0)),           # wf
            vec_spec,                                                # bf
        ],
        out_specs=pl.BlockSpec((1, tile, c_p), lambda i, t: (i, t, 0)),
        compiler_params=pltpu.CompilerParams(
            dimension_semantics=("parallel", "parallel"),
            vmem_limit_bytes=_VMEM_LIMIT_BYTES),
    )(x_bf16, filt_s, bias_comb, wr, wf, bfu)

    out = out_pad[:, :hw, :c]                              # drop spatial/channel padding
    return jnp.transpose(out.reshape(b, h, w, c), (0, 3, 1, 2))


def dcm_reference(x_nchw, params):
    """Plain-JAX reference mirroring the kernel's numerics (bf16 matmul inputs,
    f32 accumulation, folded BN / bias)."""
    b, cin, h, w = x_nchw.shape
    c = params["wr"].shape[1]
    xf = jnp.transpose(x_nchw, (0, 2, 3, 1)).reshape(b, h * w, cin)
    xb = xf.astype(jnp.bfloat16)
    gap = jnp.mean(xb.astype(jnp.float32), axis=1, keepdims=True)            # (b,1,cin)
    filt = jnp.einsum("boc,cd->bod", gap, params["wg"]) + params["bg"]       # (b,1,c)
    fs = filt * params["bn_scale"]
    bc = params["br"] * fs + params["bn_shift"]
    y = jnp.einsum("bsc,cd->bsd", xb, params["wr"].astype(jnp.bfloat16),
                   preferred_element_type=jnp.float32)
    z = jnp.maximum(y * fs + bc, 0.0)
    out = jnp.einsum("bsc,cd->bsd", z.astype(jnp.bfloat16),
                     params["wf"].astype(jnp.bfloat16),
                     preferred_element_type=jnp.float32) + params["bf"]
    return jnp.transpose(out.reshape(b, h, w, c), (0, 3, 1, 2))


def init_params(key, in_channels, channels):
    ks = jax.random.split(key, 6)
    scale = 0.05
    wg = scale * jax.random.normal(ks[0], (in_channels, channels), jnp.float32)
    bg = scale * jax.random.normal(ks[1], (1, channels), jnp.float32)
    wr = scale * jax.random.normal(ks[2], (in_channels, channels), jnp.float32)
    br = scale * jax.random.normal(ks[3], (1, channels), jnp.float32)
    wf = scale * jax.random.normal(ks[4], (channels, channels), jnp.float32)
    bf = scale * jax.random.normal(ks[5], (1, channels), jnp.float32)
    # BatchNorm2d defaults: gamma=1, beta=0, running_mean=0, running_var=1
    eps = 1e-5
    gamma = jnp.ones((1, channels), jnp.float32)
    beta = jnp.zeros((1, channels), jnp.float32)
    running_mean = jnp.zeros((1, channels), jnp.float32)
    running_var = jnp.ones((1, channels), jnp.float32)
    bn_scale = gamma / jnp.sqrt(running_var + eps)
    bn_shift = beta - running_mean * bn_scale
    return dict(wg=wg, bg=bg, wr=wr, br=br, wf=wf, bf=bf,
                bn_scale=bn_scale, bn_shift=bn_shift)


if __name__ == "__main__":
    # Small shapes consistent with the module (scaled-down in/out channels).
    B, IN_CH, CH, H, W = 2, 64, 32, 16, 16

    key = jax.random.PRNGKey(0)
    k_x, k_p = jax.random.split(key)
    x = jax.random.normal(k_x, (B, IN_CH, H, W), jnp.float32)
    params = init_params(k_p, IN_CH, CH)

    out = dcm_forward(x, params)
    out = jax.block_until_ready(out)

    ref = dcm_reference(x, params)
    assert out.shape == (B, CH, H, W)
    max_err = float(jnp.max(jnp.abs(out - ref)))
    assert jnp.allclose(out, ref, atol=2e-3, rtol=2e-2), \
        f"kernel != reference (max abs err {max_err})"

    print("KERNEL_OK")
</pallas_src>

<mosaic_0001>
module attributes {stable_mosaic.version = 11 : i64} {
  func.func @filter_gen_kernel(%arg0: i32, %arg1: i32, %arg2: memref<1x256x128xbf16, #tpu.memory_space<vmem>>, %arg3: memref<128x128xf32, #tpu.memory_space<vmem>>, %arg4: memref<1x128xf32, #tpu.memory_space<vmem>>, %arg5: memref<1x128xf32, #tpu.memory_space<vmem>>, %arg6: memref<1x128xf32, #tpu.memory_space<vmem>>, %arg7: memref<1x128xf32, #tpu.memory_space<vmem>>, %arg8: memref<1x1x128xf32, #tpu.memory_space<vmem>>, %arg9: memref<1x1x128xf32, #tpu.memory_space<vmem>>, %arg10: memref<1x128xf32, #tpu.memory_space<vmem>>) attributes {dimension_semantics = [#tpu.dimension_semantics<parallel>, #tpu.dimension_semantics<arbitrary>], iteration_bounds = array<i64: 2, 1>, scalar_prefetch = 0 : i64, scratch_operands = 1 : i64, tpu.core_type = #tpu.core_type<tc>, window_params = [{transform_indices = @transform_0, window_bounds = array<i64: 1, 256, 128>}, {pipeline_mode = #tpu.pipeline_mode<synchronous>, transform_indices = @transform_1, window_bounds = array<i64: 128, 128>}, {pipeline_mode = #tpu.pipeline_mode<synchronous>, transform_indices = @transform_2, window_bounds = array<i64: 1, 128>}, {pipeline_mode = #tpu.pipeline_mode<synchronous>, transform_indices = @transform_3, window_bounds = array<i64: 1, 128>}, {pipeline_mode = #tpu.pipeline_mode<synchronous>, transform_indices = @transform_4, window_bounds = array<i64: 1, 128>}, {pipeline_mode = #tpu.pipeline_mode<synchronous>, transform_indices = @transform_5, window_bounds = array<i64: 1, 128>}, {transform_indices = @transform_6, window_bounds = array<i64: 1, 1, 128>}, {transform_indices = @transform_7, window_bounds = array<i64: 1, 1, 128>}]} {
    %c0_i32 = arith.constant 0 : i32
    %0 = arith.cmpi eq, %arg1, %c0_i32 : i32
    %1 = arith.extui %0 : i1 to i32
    %c0_i32_0 = arith.constant 0 : i32
    %2 = arith.cmpi ne, %1, %c0_i32_0 : i32
    scf.if %2 {
      %cst_9 = arith.constant 0.000000e+00 : f32
      %14 = vector.broadcast %cst_9 : f32 to vector<1x128xf32>
      %c0_10 = arith.constant 0 : index
      %c0_11 = arith.constant 0 : index
      %15 = vector.load %arg10[%c0_10, %c0_11] : memref<1x128xf32, #tpu.memory_space<vmem>>, vector<1x128xf32>
      tpu.vector_store %arg10[%c0_10, %c0_11], %14 {strides = array<i32>} : memref<1x128xf32, #tpu.memory_space<vmem>>, vector<1x128xf32>,
    } else {
    }
    %c0 = arith.constant 0 : index
    %c0_1 = arith.constant 0 : index
    %c0_2 = arith.constant 0 : index
    %3 = vector.load %arg2[%c0, %c0_1, %c0_2] : memref<1x256x128xbf16, #tpu.memory_space<vmem>>, vector<1x256x128xbf16>
    %4 = vector.shape_cast %3 : vector<1x256x128xbf16> to vector<256x128xbf16>
    %5 = arith.extf %4 : vector<256x128xbf16> to vector<256x128xf32>
    %c0_3 = arith.constant 0 : index
    %c0_4 = arith.constant 0 : index
    %6 = vector.load %arg10[%c0_3, %c0_4] : memref<1x128xf32, #tpu.memory_space<vmem>>, vector<1x128xf32>
    %cst = arith.constant dense<0.000000e+00> : vector<128xf32>
    %7 = vector.multi_reduction <add>, %5, %cst [0] : vector<256x128xf32> to vector<128xf32>
    %8 = vector.shape_cast %7 : vector<128xf32> to vector<1x128xf32>
    %9 = arith.addf %6, %8 : vector<1x128xf32>
    %c0_5 = arith.constant 0 : index
    %c0_6 = arith.constant 0 : index
    %10 = vector.load %arg10[%c0_5, %c0_6] : memref<1x128xf32, #tpu.memory_space<vmem>>, vector<1x128xf32>
    tpu.vector_store %arg10[%c0_5, %c0_6], %9 {strides = array<i32>} : memref<1x128xf32, #tpu.memory_space<vmem>>, vector<1x128xf32>,
    %c0_i32_7 = arith.constant 0 : i32
    %11 = arith.cmpi eq, %arg1, %c0_i32_7 : i32
    %12 = arith.extui %11 : i1 to i32
    %c0_i32_8 = arith.constant 0 : i32
    %13 = arith.cmpi ne, %12, %c0_i32_8 : i32
    scf.if %13 {
      %c0_9 = arith.constant 0 : index
      %c0_10 = arith.constant 0 : index
      %14 = vector.load %arg10[%c0_9, %c0_10] : memref<1x128xf32, #tpu.memory_space<vmem>>, vector<1x128xf32>
      %cst_11 = arith.constant 3.906250e-03 : f32
      %15 = vector.broadcast %cst_11 : f32 to vector<1x128xf32>
      %16 = arith.mulf %14, %15 : vector<1x128xf32>
      %c0_12 = arith.constant 0 : index
      %c0_13 = arith.constant 0 : index
      %17 = vector.load %arg3[%c0_12, %c0_13] : memref<128x128xf32, #tpu.memory_space<vmem>>, vector<128x128xf32>
      %cst_14 = arith.constant dense<0.000000e+00> : vector<1x128xf32>
      %18 = tpu.matmul %16, %17, %cst_14 {dimension_numbers = #tpu.dot_dimension_numbers<[1], [0], [0], [1], [0, 0, 1, 1], [], []>} : vector<1x128xf32>, vector<128x128xf32>, vector<1x128xf32> -> vector<1x128xf32>
      %c0_15 = arith.constant 0 : index
      %c0_16 = arith.constant 0 : index
      %19 = vector.load %arg4[%c0_15, %c0_16] : memref<1x128xf32, #tpu.memory_space<vmem>>, vector<1x128xf32>
      %20 = arith.addf %18, %19 : vector<1x128xf32>
      %c0_17 = arith.constant 0 : index
      %c0_18 = arith.constant 0 : index
      %21 = vector.load %arg6[%c0_17, %c0_18] : memref<1x128xf32, #tpu.memory_space<vmem>>, vector<1x128xf32>
      %22 = arith.mulf %20, %21 : vector<1x128xf32>
      %c0_19 = arith.constant 0 : index
      %c0_20 = arith.constant 0 : index
      %c0_21 = arith.constant 0 : index
      %23 = vector.load %arg8[%c0_19, %c0_20, %c0_21] : memref<1x1x128xf32, #tpu.memory_space<vmem>>, vector<1x1x128xf32>
      %24 = vector.shape_cast %23 : vector<1x1x128xf32> to vector<1x128xf32>
      %25 = vector.shape_cast %22 : vector<1x128xf32> to vector<1x1x128xf32>
      tpu.vector_store %arg8[%c0_19, %c0_20, %c0_21], %25 {strides = array<i32>} : memref<1x1x128xf32, #tpu.memory_space<vmem>>, vector<1x1x128xf32>,
      %c0_22 = arith.constant 0 : index
      %c0_23 = arith.constant 0 : index
      %26 = vector.load %arg5[%c0_22, %c0_23] : memref<1x128xf32, #tpu.memory_space<vmem>>, vector<1x128xf32>
      %27 = arith.mulf %26, %22 : vector<1x128xf32>
      %c0_24 = arith.constant 0 : index
      %c0_25 = arith.constant 0 : index
      %28 = vector.load %arg7[%c0_24, %c0_25] : memref<1x128xf32, #tpu.memory_space<vmem>>, vector<1x128xf32>
      %29 = arith.addf %27, %28 : vector<1x128xf32>
      %c0_26 = arith.constant 0 : index
      %c0_27 = arith.constant 0 : index
      %c0_28 = arith.constant 0 : index
      %30 = vector.load %arg9[%c0_26, %c0_27, %c0_28] : memref<1x1x128xf32, #tpu.memory_space<vmem>>, vector<1x1x128xf32>
      %31 = vector.shape_cast %30 : vector<1x1x128xf32> to vector<1x128xf32>
      %32 = vector.shape_cast %29 : vector<1x128xf32> to vector<1x1x128xf32>
      tpu.vector_store %arg9[%c0_26, %c0_27, %c0_28], %32 {strides = array<i32>} : memref<1x1x128xf32, #tpu.memory_space<vmem>>, vector<1x1x128xf32>,
    } else {
    }
    return
  }
  func.func @transform_0(%arg0: i32, %arg1: i32) -> (i32, i32, i32) {
    %c0_i32 = arith.constant 0 : i32
    %c0_i32_0 = arith.constant 0 : i32
    return %arg0, %arg1, %c0_i32 : i32, i32, i32
  }
  func.func @transform_1(%arg0: i32, %arg1: i32) -> (i32, i32) {
    %c0_i32 = arith.constant 0 : i32
    %c0_i32_0 = arith.constant 0 : i32
    %c0_i32_1 = arith.constant 0 : i32
    return %c0_i32, %c0_i32_0 : i32, i32
  }
  func.func @transform_2(%arg0: i32, %arg1: i32) -> (i32, i32) {
    %c0_i32 = arith.constant 0 : i32
    %c0_i32_0 = arith.constant 0 : i32
    %c0_i32_1 = arith.constant 0 : i32
    return %c0_i32, %c0_i32_0 : i32, i32
  }
  func.func @transform_3(%arg0: i32, %arg1: i32) -> (i32, i32) {
    %c0_i32 = arith.constant 0 : i32
    %c0_i32_0 = arith.constant 0 : i32
    %c0_i32_1 = arith.constant 0 : i32
    return %c0_i32, %c0_i32_0 : i32, i32
  }
  func.func @transform_4(%arg0: i32, %arg1: i32) -> (i32, i32) {
    %c0_i32 = arith.constant 0 : i32
    %c0_i32_0 = arith.constant 0 : i32
    %c0_i32_1 = arith.constant 0 : i32
    return %c0_i32, %c0_i32_0 : i32, i32
  }
  func.func @transform_5(%arg0: i32, %arg1: i32) -> (i32, i32) {
    %c0_i32 = arith.constant 0 : i32
    %c0_i32_0 = arith.constant 0 : i32
    %c0_i32_1 = arith.constant 0 : i32
    return %c0_i32, %c0_i32_0 : i32, i32
  }
  func.func @transform_6(%arg0: i32, %arg1: i32) -> (i32, i32, i32) {
    %c0_i32 = arith.constant 0 : i32
    %c0_i32_0 = arith.constant 0 : i32
    %c0_i32_1 = arith.constant 0 : i32
    return %arg0, %c0_i32, %c0_i32_0 : i32, i32, i32
  }
  func.func @transform_7(%arg0: i32, %arg1: i32) -> (i32, i32, i32) {
    %c0_i32 = arith.constant 0 : i32
    %c0_i32_0 = arith.constant 0 : i32
    %c0_i32_1 = arith.constant 0 : i32
    return %arg0, %c0_i32, %c0_i32_0 : i32, i32, i32
  }
}

</mosaic_0001>

<llo_original>
// kernel: tpu_custom_call.1
$region0: #{tpu_custom_call.1}
  #allocation0 [shape = 'u32[]', space=smem, size = 0x4, offset = 0x4, fixed_abs, tag = 'smem constant byte address 0x4 - core index']
  #allocation1 [shape = 'u32[144,128]{1,0:T(1,128)}', space=vmem, size = 0x12000, scoped, tag = 'internal scratch']
  #allocation2 [shape = 'f32[1,128]{1,0:T(1,128)}', space=vmem, size = 0x200, scoped, tag = 'scratch operand']
  %s0 = inlined_call_operand.hbm [shape: bf16[2,256,128], index: 0, kind: input, shape index: {}]
  %s1 = inlined_call_operand.hbm [shape: f32[128,128], index: 1, kind: input, shape index: {}]
  %s2 = inlined_call_operand.vmem [shape: f32[1,128], index: 2, kind: input, shape index: {}]
  %s3 = inlined_call_operand.vmem [shape: f32[1,128], index: 3, kind: input, shape index: {}]
  %s4 = inlined_call_operand.vmem [shape: f32[1,128], index: 4, kind: input, shape index: {}]
  %s5 = inlined_call_operand.vmem [shape: f32[1,128], index: 5, kind: input, shape index: {}]
  %s6 = inlined_call_operand.hbm [shape: f32[2,1,128], index: 6, kind: output, shape index: {0}]
  %s7 = inlined_call_operand.hbm [shape: f32[2,1,128], index: 7, kind: output, shape index: {1}]
  %8 = xla_tuple %s6, %s7
  %s9 = sld [smem:[#allocation0]]
  $region81: #{tpu_custom_call.1} parent=0
    _
  %s11 = ssub.s32 1, %s9
  %s12 = scalar_select 0, %s11, %s9
  $region1: #{tpu_custom_call.1} parent=0
    #allocation3 [shape = 'u8[131072]{0}', space=vmem, size = 0x20000, scoped, tag = 'input window, operand 0']
    #allocation4 [shape = 's32[2]{0}', space=sflag, size = 0x8, scoped, tag = 'scoped memory for tpu_custom_call.1']
    #allocation5 [shape = 's32[2]{0}', space=sflag, size = 0x8, scoped, tag = 'scoped memory for tpu_custom_call.1']
    #allocation6 [shape = 'u8[65536]{0}', space=vmem, size = 0x10000, scoped, tag = 'input window, operand 1, single buffered']
    #allocation7 [shape = 's32[1]{0}', space=sflag, size = 0x4, scoped, tag = 'scoped memory for tpu_custom_call.1']
    #allocation8 [shape = 'u8[1024]{0}', space=vmem, size = 0x400, scoped, tag = 'output window, operand 0']
    #allocation9 [shape = 'u8[1024]{0}', space=vmem, size = 0x400, scoped, tag = 'output window, operand 1']
    #allocation10 [shape = 's32[2]{0}', space=sflag, size = 0x8, scoped, tag = 'scoped memory for tpu_custom_call.1']
    %13 = vsyncpa [#allocation4], 0
    %s14 = scalar_lea.sflag [#allocation4], 1
    %15 = vsyncpa %s14, 0
    %16 = vsyncpa [#allocation7], 0
    %17 = vsyncpa [#allocation5], 0
    %s18 = scalar_lea.sflag [#allocation5], 1
    %19 = vsyncpa %s18, 0
    %20 = vsyncpa [#allocation10], 0
    %s21 = scalar_lea.sflag [#allocation10], 1
    %22 = vsyncpa %s21, 0
    loop: start=0, step=1, limit=4
    $region2: #{tpu_custom_call.1} parent=1 // loop_pre_header
      _
    $region3: #{tpu_custom_call.1} parent=1 // loop_header
      %s24 = sphi 0, %s28
      %p25 = scmp.ge.s32.totalorder %s24, 4
      %s31 = sphi 0, %s43
      %s32 = sphi 0, %s39
      %s33 = sphi 0, %s31
      %s34 = sphi 0, %s32
      %s35 = sphi 0, %s33
      %s36 = sphi 0, %s34
      %s48 = sphi 0, %s50
      %s51 = sphi 0, %s48
      %s52 = sphi 0, %s51
      %s68 = sphi 0, %s52
      %s72 = sphi 0, %s72
      %s74 = sphi 0, %s72
      %s75 = sphi 0, %s74
      %s89 = sphi 0, %s75
      %s93 = sphi 0, %s93
      %s95 = sphi 0, %s93
      %s96 = sphi 0, %s95
      %s110 = sphi 0, %s96
      %s114 = sphi 0, %s114
      %s116 = sphi 0, %s114
      %s117 = sphi 0, %s116
      %s131 = sphi 0, %s117
      %s135 = sphi 0, %s135
      %s137 = sphi 0, %s135
      %s138 = sphi 0, %s137
      %s152 = sphi 0, %s138
      %s156 = sphi 0, %s156
      %s158 = sphi 0, %s156
      %s159 = sphi 0, %s158
      %s173 = sphi 0, %s159
      %s179 = sphi 0, %s181
      %s182 = sphi 0, %s179
      %s183 = sphi 0, %s182
      %s199 = sphi 0, %s183
      %s205 = sphi 0, %s207
      %s208 = sphi 0, %s205
      %s209 = sphi 0, %s208
      %s225 = sphi 0, %s209
    $region4: #{tpu_custom_call.1} parent=1 // loop_header_branch
      %27 = sbr.rel (%p25) target = $region8
    $region5: #{tpu_custom_call.1} parent=1 // loop_body
      %s29 = ssub.s32 %s24, 1
      %s30 = ssub.s32 %s24, 2
      %s37 = sadd.s32 1, %s32
      %p38 = scmp.ge.s32.totalorder %s37, 1
      %s39 = scalar_select %p38, 0, %s37
      %s40 = sadd.s32 1, %s31
      %s41 = scalar_select %p38, %s40, %s31
      %p42 = scmp.ge.s32.totalorder %s41, 2
      %s43 = scalar_select %p42, 0, %s41
      %s44 = ssub.s32 %s31, %s43
      %s45 = ssub.s32 %s32, %s39
      %s46 = sor.u32 %s44, %s45
      %p47 = scmp.eq.s32.totalorder %s46, 0
      %s49 = sadd.s32 %s48, 1
      %s50 = scalar_select %p47, %s48, %s49
      %p53 = pneg %p47
      %p54 = scmp.eq.s32.totalorder %s24, 1
      %p55 = por %p53, %p54
      %p56 = scmp.ne.s32.totalorder %s48, %s51
      %p57 = scmp.eq.s32.totalorder %s24, 0
      %p58 = por %p56, %p57
      %p59 = scmp.ne.s32.totalorder %s48, %s51
      %p60 = scmp.eq.s32.totalorder %s29, 1
      %p61 = por %p59, %p60
      %p62 = scmp.ne.s32.totalorder %s51, %s52
      %p63 = scmp.eq.s32.totalorder %s29, 0
      %p64 = por %p62, %p63
      %p65 = scmp.ne.s32.totalorder %s51, %s52
      %p66 = scmp.eq.s32.totalorder %s30, 1
      %p67 = por %p65, %p66
      %p69 = scmp.ne.s32.totalorder %s52, %s68
      %p70 = scmp.eq.s32.totalorder %s30, 0
      %p71 = por %p69, %p70
      %s73 = sadd.s32 %s72, 1
      %p76 = scmp.eq.s32.totalorder %s24, 1
      %p77 = scmp.ne.s32.totalorder %s72, %s74
      %p78 = scmp.eq.s32.totalorder %s24, 0
      %p79 = por %p77, %p78
      %p80 = scmp.ne.s32.totalorder %s72, %s74
      %p81 = scmp.eq.s32.totalorder %s29, 1
      %p82 = por %p80, %p81
      %p83 = scmp.ne.s32.totalorder %s74, %s75
      %p84 = scmp.eq.s32.totalorder %s29, 0
      %p85 = por %p83, %p84
      %p86 = scmp.ne.s32.totalorder %s74, %s75
      %p87 = scmp.eq.s32.totalorder %s30, 1
      %p88 = por %p86, %p87
      %p90 = scmp.ne.s32.totalorder %s75, %s89
      %p91 = scmp.eq.s32.totalorder %s30, 0
      %p92 = por %p90, %p91
      %s94 = sadd.s32 %s93, 1
      %p97 = scmp.eq.s32.totalorder %s24, 1
      %p98 = scmp.ne.s32.totalorder %s93, %s95
      %p99 = scmp.eq.s32.totalorder %s24, 0
      %p100 = por %p98, %p99
      %p101 = scmp.ne.s32.totalorder %s93, %s95
      %p102 = scmp.eq.s32.totalorder %s29, 1
      %p103 = por %p101, %p102
      %p104 = scmp.ne.s32.totalorder %s95, %s96
      %p105 = scmp.eq.s32.totalorder %s29, 0
      %p106 = por %p104, %p105
      %p107 = scmp.ne.s32.totalorder %s95, %s96
      %p108 = scmp.eq.s32.totalorder %s30, 1
      %p109 = por %p107, %p108
      %p111 = scmp.ne.s32.totalorder %s96, %s110
      %p112 = scmp.eq.s32.totalorder %s30, 0
      %p113 = por %p111, %p112
      %s115 = sadd.s32 %s114, 1
      %p118 = scmp.eq.s32.totalorder %s24, 1
      %p119 = scmp.ne.s32.totalorder %s114, %s116
      %p120 = scmp.eq.s32.totalorder %s24, 0
      %p121 = por %p119, %p120
      %p122 = scmp.ne.s32.totalorder %s114, %s116
      %p123 = scmp.eq.s32.totalorder %s29, 1
      %p124 = por %p122, %p123
      %p125 = scmp.ne.s32.totalorder %s116, %s117
      %p126 = scmp.eq.s32.totalorder %s29, 0
      %p127 = por %p125, %p126
      %p128 = scmp.ne.s32.totalorder %s116, %s117
      %p129 = scmp.eq.s32.totalorder %s30, 1
      %p130 = por %p128, %p129
      %p132 = scmp.ne.s32.totalorder %s117, %s131
      %p133 = scmp.eq.s32.totalorder %s30, 0
      %p134 = por %p132, %p133
      %s136 = sadd.s32 %s135, 1
      %p139 = scmp.eq.s32.totalorder %s24, 1
      %p140 = scmp.ne.s32.totalorder %s135, %s137
      %p141 = scmp.eq.s32.totalorder %s24, 0
      %p142 = por %p140, %p141
      %p143 = scmp.ne.s32.totalorder %s135, %s137
      %p144 = scmp.eq.s32.totalorder %s29, 1
      %p145 = por %p143, %p144
      %p146 = scmp.ne.s32.totalorder %s137, %s138
      %p147 = scmp.eq.s32.totalorder %s29, 0
      %p148 = por %p146, %p147
      %p149 = scmp.ne.s32.totalorder %s137, %s138
      %p150 = scmp.eq.s32.totalorder %s30, 1
      %p151 = por %p149, %p150
      %p153 = scmp.ne.s32.totalorder %s138, %s152
      %p154 = scmp.eq.s32.totalorder %s30, 0
      %p155 = por %p153, %p154
      %s157 = sadd.s32 %s156, 1
      %p160 = scmp.eq.s32.totalorder %s24, 1
      %p161 = scmp.ne.s32.totalorder %s156, %s158
      %p162 = scmp.eq.s32.totalorder %s24, 0
      %p163 = por %p161, %p162
      %p164 = scmp.ne.s32.totalorder %s156, %s158
      %p165 = scmp.eq.s32.totalorder %s29, 1
      %p166 = por %p164, %p165
      %p167 = scmp.ne.s32.totalorder %s158, %s159
      %p168 = scmp.eq.s32.totalorder %s29, 0
      %p169 = por %p167, %p168
      %p170 = scmp.ne.s32.totalorder %s158, %s159
      %p171 = scmp.eq.s32.totalorder %s30, 1
      %p172 = por %p170, %p171
      %p174 = scmp.ne.s32.totalorder %s159, %s173
      %p175 = scmp.eq.s32.totalorder %s30, 0
      %p176 = por %p174, %p175
      %s177 = ssub.s32 %s31, %s43
      %p178 = scmp.eq.s32.totalorder %s177, 0
      %s180 = sadd.s32 %s179, 1
      %s181 = scalar_select %p178, %s179, %s180
      %p184 = pneg %p178
      %p185 = scmp.eq.s32.totalorder %s24, 1
      %p186 = por %p184, %p185
      %p187 = scmp.ne.s32.totalorder %s179, %s182
      %p188 = scmp.eq.s32.totalorder %s24, 0
      %p189 = por %p187, %p188
      %p190 = scmp.ne.s32.totalorder %s179, %s182
      %p191 = scmp.eq.s32.totalorder %s29, 1
      %p192 = por %p190, %p191
      %p193 = scmp.ne.s32.totalorder %s182, %s183
      %p194 = scmp.eq.s32.totalorder %s29, 0
      %p195 = por %p193, %p194
      %p196 = scmp.ne.s32.totalorder %s182, %s183
      %p197 = scmp.eq.s32.totalorder %s30, 1
      %p198 = por %p196, %p197
      %p200 = scmp.ne.s32.totalorder %s183, %s199
      %p201 = scmp.eq.s32.totalorder %s30, 0
      %p202 = por %p200, %p201
      %s203 = ssub.s32 %s31, %s43
      %p204 = scmp.eq.s32.totalorder %s203, 0
      %s206 = sadd.s32 %s205, 1
      %s207 = scalar_select %p204, %s205, %s206
      %p210 = pneg %p204
      %p211 = scmp.eq.s32.totalorder %s24, 1
      %p212 = por %p210, %p211
      %p213 = scmp.ne.s32.totalorder %s205, %s208
      %p214 = scmp.eq.s32.totalorder %s24, 0
      %p215 = por %p213, %p214
      %p216 = scmp.ne.s32.totalorder %s205, %s208
      %p217 = scmp.eq.s32.totalorder %s29, 1
      %p218 = por %p216, %p217
      %p219 = scmp.ne.s32.totalorder %s208, %s209
      %p220 = scmp.eq.s32.totalorder %s29, 0
      %p221 = por %p219, %p220
      %p222 = scmp.ne.s32.totalorder %s208, %s209
      %p223 = scmp.eq.s32.totalorder %s30, 1
      %p224 = por %p222, %p223
      %p226 = scmp.ne.s32.totalorder %s209, %s225
      %p227 = scmp.eq.s32.totalorder %s30, 0
      %p228 = por %p226, %p227
      %p229 = scmp.le.s32.totalorder 1, %s24
      %p230 = scmp.lt.s32.totalorder %s24, 3
      %p231 = pnand %p229, %p230
      %p232 = pneg %p231
      // Predicated region
      $region9: #{tpu_custom_call.1} parent=5 // pred_check
        _
      $region10: #{tpu_custom_call.1} parent=5 // pred_check_branch
        %234 = sbr.rel (%p231) target = $region12
      $region11: #{tpu_custom_call.1} parent=5 // pred_region
        %s235 = ssub.s32 %s24, 1
        // Predicated region
        $region13: #{tpu_custom_call.1} parent=11 // pred_check
          %p236 = pneg %p85
        $region14: #{tpu_custom_call.1} parent=11 // pred_check_branch
          %238 = sbr.rel (%p236) target = $region16
        $region15: #{tpu_custom_call.1} parent=11 // pred_region
          %s240 = ssub.s32 2048, 2048
          %241 = vsyncadd [#allocation7], %s240
          %s242 = sshll.u32 [#allocation6], 4
          %s243 = int_to_ptr.vmem [resolvable:$true] %s242
          %248 = dma.hbm_to_vmem [thread:$0]  %s1, 2048, %s243, [#allocation7], 128, 128, 8
        $region16: #{tpu_custom_call.1} parent=11 // pred_fallthru
          _
        // Predicated region
        $region17: #{tpu_custom_call.1} parent=11 // pred_check
          %p249 = pneg %p106
        $region18: #{tpu_custom_call.1} parent=11 // pred_check_branch
          %251 = sbr.rel (%p249) target = $region20
        $region19: #{tpu_custom_call.1} parent=11 // pred_region
          _
        $region20: #{tpu_custom_call.1} parent=11 // pred_fallthru
          _
        // Predicated region
        $region21: #{tpu_custom_call.1} parent=11 // pred_check
          %p252 = pneg %p127
        $region22: #{tpu_custom_call.1} parent=11 // pred_check_branch
          %254 = sbr.rel (%p252) target = $region24
        $region23: #{tpu_custom_call.1} parent=11 // pred_region
          _
        $region24: #{tpu_custom_call.1} parent=11 // pred_fallthru
          _
        // Predicated region
        $region25: #{tpu_custom_call.1} parent=11 // pred_check
          %p255 = pneg %p148
        $region26: #{tpu_custom_call.1} parent=11 // pred_check_branch
          %257 = sbr.rel (%p255) target = $region28
        $region27: #{tpu_custom_call.1} parent=11 // pred_region
          _
        $region28: #{tpu_custom_call.1} parent=11 // pred_fallthru
          _
        // Predicated region
        $region29: #{tpu_custom_call.1} parent=11 // pred_check
          %p258 = pneg %p169
        $region30: #{tpu_custom_call.1} parent=11 // pred_check_branch
          %260 = sbr.rel (%p258) target = $region32
        $region31: #{tpu_custom_call.1} parent=11 // pred_region
          _
        $region32: #{tpu_custom_call.1} parent=11 // pred_fallthru
          _
      $region12: #{tpu_custom_call.1} parent=5 // pred_fallthru
        _
      %p261 = scmp.lt.s32.totalorder %s24, 2
      // Predicated region
      $region33: #{tpu_custom_call.1} parent=5 // pred_check
        %p262 = pneg %p261
      $region34: #{tpu_custom_call.1} parent=5 // pred_check_branch
        %264 = sbr.rel (%p262) target = $region36
      $region35: #{tpu_custom_call.1} parent=5 // pred_region
        // Predicated region
        $region37: #{tpu_custom_call.1} parent=35 // pred_check
          %p265 = pneg %p58
        $region38: #{tpu_custom_call.1} parent=35 // pred_check_branch
          %267 = sbr.rel (%p265) target = $region40
        $region39: #{tpu_custom_call.1} parent=35 // pred_region
          %s268 = sand.u32 %s48, 1
          %s269 = scalar_lea.sflag [#allocation4], %s268
          %s270 = sand.u32 %s48, 1
          %s271 = smul.addr %s270, 128
          %s272 = scalar_lea.vmem [#allocation3], %s271
          %s273 = smul.u32 32, %s32
          %s275 = ssub.s32 2048, 2048
          %276 = vsyncadd %s269, %s275
          %s277 = smul.addr %s31, 32
          %s278 = sadd.s32 %s273, %s277
          %s279 = smul.addr %s278, 64
          %s280 = scalar_lea.hbm %s0, %s279
          %s281 = sshll.u32 %s272, 4
          %s282 = int_to_ptr.vmem [resolvable:$true] %s281
          %287 = dma.hbm_to_vmem [thread:$0]  %s280, 2048, %s282, %s269, 64, 64, 4
        $region40: #{tpu_custom_call.1} parent=35 // pred_fallthru
          _
      $region36: #{tpu_custom_call.1} parent=5 // pred_fallthru
        _
      %p288 = scmp.le.s32.totalorder 1, %s24
      %p289 = scmp.lt.s32.totalorder %s24, 3
      %p290 = pnand %p288, %p289
      %p291 = pneg %p290
      // Predicated region
      $region41: #{tpu_custom_call.1} parent=5 // pred_check
        _
      $region42: #{tpu_custom_call.1} parent=5 // pred_check_branch
        %293 = sbr.rel (%p290) target = $region44
      $region43: #{tpu_custom_call.1} parent=5 // pred_region
        %s294 = ssub.s32 %s24, 1
        %s295 = sand.u32 %s51, 1
        %s296 = scalar_lea.sflag [#allocation4], %s295
        %s297 = sand.u32 %s51, 1
        %s298 = smul.addr %s297, 128
        %s299 = scalar_lea.vmem [#allocation3], %s298
        // Predicated region
        $region45: #{tpu_custom_call.1} parent=43 // pred_check
          %p300 = pneg %p64
        $region46: #{tpu_custom_call.1} parent=43 // pred_check_branch
          %302 = sbr.rel (%p300) target = $region48
        $region47: #{tpu_custom_call.1} parent=43 // pred_region
          %303 = dma.done %s296, 2048
        $region48: #{tpu_custom_call.1} parent=43 // pred_fallthru
          _
        // Predicated region
        $region49: #{tpu_custom_call.1} parent=43 // pred_check
          %p304 = pneg %p85
        $region50: #{tpu_custom_call.1} parent=43 // pred_check_branch
          %306 = sbr.rel (%p304) target = $region52
        $region51: #{tpu_custom_call.1} parent=43 // pred_region
          %307 = dma.done [#allocation7], 2048
        $region52: #{tpu_custom_call.1} parent=43 // pred_fallthru
          _
        %s308 = sand.u32 %s51, 1
        %s309 = scalar_lea.sflag [#allocation4], %s308
        %s310 = sand.u32 %s51, 1
        %s311 = smul.addr %s310, 128
        %s312 = scalar_lea.vmem [#allocation3], %s311
        %p313 = pneg %p64
        %p314 = pneg %p61
        %p315 = pneg %p85
        %p316 = pneg %p82
        %p317 = pneg %p106
        %p318 = pneg %p103
        %p319 = pneg %p127
        %p320 = pneg %p124
        %p321 = pneg %p148
        %p322 = pneg %p145
        %p323 = pneg %p169
        %p324 = pneg %p166
        %p325 = pneg %p195
        %p326 = pneg %p192
        %s327 = sand.u32 %s182, 1
        %s328 = scalar_lea.sflag [#allocation5], %s327
        %s329 = sand.u32 %s182, 1
        %s330 = scalar_lea.vmem [#allocation8], %s329
        %p331 = pneg %p221
        %p332 = pneg %p218
        %s333 = sand.u32 %s208, 1
        %s334 = scalar_lea.sflag [#allocation10], %s333
        %s335 = sand.u32 %s208, 1
        %s336 = scalar_lea.vmem [#allocation9], %s335
        %s337 = smul.u32 32, %s34
        %p338 = scmp.eq.s32.totalorder %s34, 0
        // Predicated region
        $region53: #{tpu_custom_call.1} parent=43 // pred_check
          %p339 = pneg %p338
        $region54: #{tpu_custom_call.1} parent=43 // pred_check_branch
          %341 = sbr.rel (%p339) target = $region56
        $region55: #{tpu_custom_call.1} parent=43 // pred_region
          %342 = vst [vmem:[#allocation2] sm:$0x1] 0.0
        $region56: #{tpu_custom_call.1} parent=43 // pred_fallthru
          _
        %v343 = vld [vmem:[%s299] sm:$0xf]
        %v344 = vld [vmem:[%s299 + $0x4] sm:$0xf]
        %v345 = vld [vmem:[%s299 + $0x8] sm:$0xf]
        %v346 = vld [vmem:[%s299 + $0xc] sm:$0xf]
        %v347 = vld [vmem:[%s299 + $0x10] sm:$0xf]
        %v348 = vld [vmem:[%s299 + $0x14] sm:$0xf]
        %v349 = vld [vmem:[%s299 + $0x18] sm:$0xf]
        %v350 = vld [vmem:[%s299 + $0x1c] sm:$0xf]
        %v351 = vld [vmem:[%s299 + $0x20] sm:$0xf]
        %v352 = vld [vmem:[%s299 + $0x24] sm:$0xf]
        %v353 = vld [vmem:[%s299 + $0x28] sm:$0xf]
        %v354 = vld [vmem:[%s299 + $0x2c] sm:$0xf]
        %v355 = vld [vmem:[%s299 + $0x30] sm:$0xf]
        %v356 = vld [vmem:[%s299 + $0x34] sm:$0xf]
        %v357 = vld [vmem:[%s299 + $0x38] sm:$0xf]
        %v358 = vld [vmem:[%s299 + $0x3c] sm:$0xf]
        %v359 = vld [vmem:[%s299 + $0x40] sm:$0xf]
        %v360 = vld [vmem:[%s299 + $0x44] sm:$0xf]
        %v361 = vld [vmem:[%s299 + $0x48] sm:$0xf]
        %v362 = vld [vmem:[%s299 + $0x4c] sm:$0xf]
        %v363 = vld [vmem:[%s299 + $0x50] sm:$0xf]
        %v364 = vld [vmem:[%s299 + $0x54] sm:$0xf]
        %v365 = vld [vmem:[%s299 + $0x58] sm:$0xf]
        %v366 = vld [vmem:[%s299 + $0x5c] sm:$0xf]
        %v367 = vld [vmem:[%s299 + $0x60] sm:$0xf]
        %v368 = vld [vmem:[%s299 + $0x64] sm:$0xf]
        %v369 = vld [vmem:[%s299 + $0x68] sm:$0xf]
        %v370 = vld [vmem:[%s299 + $0x6c] sm:$0xf]
        %v371 = vld [vmem:[%s299 + $0x70] sm:$0xf]
        %v372 = vld [vmem:[%s299 + $0x74] sm:$0xf]
        %v373 = vld [vmem:[%s299 + $0x78] sm:$0xf]
        %v374 = vld [vmem:[%s299 + $0x7c] sm:$0xf]
        %v375 = vunpack.c.l.bf16 %v343
        %v376 = vunpack.c.l.bf16 %v344
        %v377 = vunpack.c.l.bf16 %v345
        %v378 = vunpack.c.l.bf16 %v346
        %v379 = vunpack.c.l.bf16 %v347
        %v380 = vunpack.c.l.bf16 %v348
        %v381 = vunpack.c.l.bf16 %v349
        %v382 = vunpack.c.l.bf16 %v350
        %v383 = vunpack.c.l.bf16 %v351
        %v384 = vunpack.c.l.bf16 %v352
        %v385 = vunpack.c.l.bf16 %v353
        %v386 = vunpack.c.l.bf16 %v354
        %v387 = vunpack.c.l.bf16 %v355
        %v388 = vunpack.c.l.bf16 %v356
        %v389 = vunpack.c.l.bf16 %v357
        %v390 = vunpack.c.l.bf16 %v358
        %v391 = vunpack.c.l.bf16 %v359
        %v392 = vunpack.c.l.bf16 %v360
        %v393 = vunpack.c.l.bf16 %v361
        %v394 = vunpack.c.l.bf16 %v362
        %v395 = vunpack.c.l.bf16 %v363
        %v396 = vunpack.c.l.bf16 %v364
        %v397 = vunpack.c.l.bf16 %v365
        %v398 = vunpack.c.l.bf16 %v366
        %v399 = vunpack.c.l.bf16 %v367
        %v400 = vunpack.c.l.bf16 %v368
        %v401 = vunpack.c.l.bf16 %v369
        %v402 = vunpack.c.l.bf16 %v370
        %v403 = vunpack.c.l.bf16 %v371
        %v404 = vunpack.c.l.bf16 %v372
        %v405 = vunpack.c.l.bf16 %v373
        %v406 = vunpack.c.l.bf16 %v374
        %v407 = vld [vmem:[#allocation2] sm:$0x1]
        %v408 = vadd.f32 %v375, %v376
        %v409 = vadd.f32 %v408, %v377
        %v410 = vadd.f32 %v409, %v378
        %v411 = vadd.f32 %v410, %v379
        %v412 = vadd.f32 %v411, %v380
        %v413 = vadd.f32 %v412, %v381
        %v414 = vadd.f32 %v413, %v382
        %v415 = vadd.f32 %v414, %v383
        %v416 = vadd.f32 %v415, %v384
        %v417 = vadd.f32 %v416, %v385
        %v418 = vadd.f32 %v417, %v386
        %v419 = vadd.f32 %v418, %v387
        %v420 = vadd.f32 %v419, %v388
        %v421 = vadd.f32 %v420, %v389
        %v422 = vadd.f32 %v421, %v390
        %v423 = vadd.f32 %v422, %v391
        %v424 = vadd.f32 %v423, %v392
        %v425 = vadd.f32 %v424, %v393
        %v426 = vadd.f32 %v425, %v394
        %v427 = vadd.f32 %v426, %v395
        %v428 = vadd.f32 %v427, %v396
        %v429 = vadd.f32 %v428, %v397
        %v430 = vadd.f32 %v429, %v398
        %v431 = vadd.f32 %v430, %v399
        %v432 = vadd.f32 %v431, %v400
        %v433 = vadd.f32 %v432, %v401
        %v434 = vadd.f32 %v433, %v402
        %v435 = vadd.f32 %v434, %v403
        %v436 = vadd.f32 %v435, %v404
        %v437 = vadd.f32 %v436, %v405
        %v438 = vadd.f32 %v437, %v406
        %v439 = vrot.slane %v438, 4
        %v440 = vadd.f32 %v438, %v439
        %v441 = vrot.slane %v440, 2
        %v442 = vadd.f32 %v440, %v441
        %v443 = vrot.slane %v442, 1
        %v444 = vadd.f32 %v442, %v443
        %v445 = vadd.f32 %v407, %v444
        %446 = vst [vmem:[#allocation2] sm:$0x1] %v445
        // Predicated region
        $region57: #{tpu_custom_call.1} parent=43 // pred_check
          %p447 = pneg %p338
        $region58: #{tpu_custom_call.1} parent=43 // pred_check_branch
          %449 = sbr.rel (%p447) target = $region60
        $region59: #{tpu_custom_call.1} parent=43 // pred_region
          %v450 = vld [vmem:[#allocation2] sm:$0x1]
          %v451 = vmul.f32 %v450, 0.00390625
          %v452 = vld [vmem:[#allocation6] sm:$0xff]
          %v453 = vld [vmem:[#allocation6 + $0x8] sm:$0xff]
          %v454 = vld [vmem:[#allocation6 + $0x10] sm:$0xff]
          %v455 = vld [vmem:[#allocation6 + $0x18] sm:$0xff]
          %v456 = vld [vmem:[#allocation6 + $0x20] sm:$0xff]
          %v457 = vld [vmem:[#allocation6 + $0x28] sm:$0xff]
          %v458 = vld [vmem:[#allocation6 + $0x30] sm:$0xff]
          %v459 = vld [vmem:[#allocation6 + $0x38] sm:$0xff]
          %v460 = vld [vmem:[#allocation6 + $0x40] sm:$0xff]
          %v461 = vld [vmem:[#allocation6 + $0x48] sm:$0xff]
          %v462 = vld [vmem:[#allocation6 + $0x50] sm:$0xff]
          %v463 = vld [vmem:[#allocation6 + $0x58] sm:$0xff]
          %v464 = vld [vmem:[#allocation6 + $0x60] sm:$0xff]
          %v465 = vld [vmem:[#allocation6 + $0x68] sm:$0xff]
          %v466 = vld [vmem:[#allocation6 + $0x70] sm:$0xff]
          %v467 = vld [vmem:[#allocation6 + $0x78] sm:$0xff]
          %v468 = vld [vmem:[%s2] sm:$0x1]
          %469 = vmatprep.subr.mxu0 0.0
          %470 = vmatpush1.msra.mxu0 %v467
          %471 = vmatprep.subr.mxu0 0.0
          %472 = vmatpush1.msra.mxu0 %v466
          %473 = vmatprep.subr.mxu0 0.0
          %474 = vmatpush1.msra.mxu0 %v465
          %475 = vmatprep.subr.mxu0 0.0
          %476 = vmatpush1.msra.mxu0 %v464
          %477 = vmatprep.subr.mxu0 0.0
          %478 = vmatpush1.msra.mxu0 %v463
          %479 = vmatprep.subr.mxu0 0.0
          %480 = vmatpush1.msra.mxu0 %v462
          %481 = vmatprep.subr.mxu0 0.0
          %482 = vmatpush1.msra.mxu0 %v461
          %483 = vmatprep.subr.mxu0 0.0
          %484 = vmatpush1.msra.mxu0 %v460
          %485 = vmatprep.subr.mxu0 0.0
          %486 = vmatpush1.msra.mxu0 %v459
          %487 = vmatprep.subr.mxu0 0.0
          %488 = vmatpush1.msra.mxu0 %v458
          %489 = vmatprep.subr.mxu0 0.0
          %490 = vmatpush1.msra.mxu0 %v457
          %491 = vmatprep.subr.mxu0 0.0
          %492 = vmatpush1.msra.mxu0 %v456
          %493 = vmatprep.subr.mxu0 0.0
          %494 = vmatpush1.msra.mxu0 %v455
          %495 = vmatprep.subr.mxu0 0.0
          %496 = vmatpush1.msra.mxu0 %v454
          %497 = vmatprep.subr.mxu0 0.0
          %498 = vmatpush1.msra.mxu0 %v453
          %499 = vmatprep.subr.mxu0 0.0
          %500 = vmatpush1.msra.mxu0 %v452
          %501 = vmatprep.subr.mxu0 0.0
          %502 = vmatpush2.msra.mxu0 0.0
          %503 = vmatprep.subr.mxu0 0.0
          %504 = vmatpush2.msra.mxu0 0.0
          %505 = vmatprep.subr.mxu0 0.0
          %506 = vmatpush2.msra.mxu0 0.0
          %507 = vmatprep.subr.mxu0 0.0
          %508 = vmatpush2.msra.mxu0 0.0
          %509 = vmatprep.subr.mxu0 0.0
          %510 = vmatpush2.msra.mxu0 0.0
          %511 = vmatprep.subr.mxu0 0.0
          %512 = vmatpush2.msra.mxu0 0.0
          %513 = vmatprep.subr.mxu0 0.0
          %514 = vmatpush2.msra.mxu0 0.0
          %515 = vmatprep.subr.mxu0 0.0
          %516 = vmatpush2.msra.mxu0 0.0
          %517 = vmatprep.subr.mxu0 0.0
          %518 = vmatpush2.msra.mxu0 0.0
          %519 = vmatprep.subr.mxu0 0.0
          %520 = vmatpush2.msra.mxu0 0.0
          %521 = vmatprep.subr.mxu0 0.0
          %522 = vmatpush2.msra.mxu0 0.0
          %523 = vmatprep.subr.mxu0 0.0
          %524 = vmatpush2.msra.mxu0 0.0
          %525 = vmatprep.subr.mxu0 0.0
          %526 = vmatpush2.msra.mxu0 0.0
          %527 = vmatprep.subr.mxu0 0.0
          %528 = vmatpush2.msra.mxu0 0.0
          %529 = vmatprep.subr.mxu0 0.0
          %530 = vmatpush2.msra.mxu0 0.0
          %531 = vmatprep.subr.mxu0 0.0
          %532 = vmatpush2.msra.mxu0 0.0
          %533 = vmatprep.mubr.f32.mxu0 0.0
          %534 = vmatmul.mubr.f32.gmra.mxu0 %v451
          %v535 = vpop.f32.mrf.mxu0
          %v536 = vadd.f32 %v468, %v535
          %v537 = vpop.f32.mrf.mxu0
          %538 = vdwg.mxu0
          %v539 = vld [vmem:[%s4] sm:$0x1]
          %v540 = vmul.f32 %v536, %v539
          %541 = vst [vmem:[%s330] sm:$0x1] %v540
          %v542 = vld [vmem:[%s3] sm:$0x1]
          %v543 = vmul.f32 %v542, %v540
          %v544 = vld [vmem:[%s5] sm:$0x1]
          %v545 = vadd.f32 %v543, %v544
          %546 = vst [vmem:[%s336] sm:$0x1] %v545
        $region60: #{tpu_custom_call.1} parent=43 // pred_fallthru
          _
        %s547 = sand.u32 %s182, 1
        %s548 = scalar_lea.sflag [#allocation5], %s547
        %s549 = sand.u32 %s182, 1
        %s550 = scalar_lea.vmem [#allocation8], %s549
        %s551 = sand.u32 %s208, 1
        %s552 = scalar_lea.sflag [#allocation10], %s551
        %s553 = sand.u32 %s208, 1
        %s554 = scalar_lea.vmem [#allocation9], %s553
        // Predicated region
        $region61: #{tpu_custom_call.1} parent=43 // pred_check
          %p555 = pneg %p192
        $region62: #{tpu_custom_call.1} parent=43 // pred_check_branch
          %557 = sbr.rel (%p555) target = $region64
        $region63: #{tpu_custom_call.1} parent=43 // pred_region
          %s559 = ssub.s32 16, 16
          %560 = vsyncadd %s548, %s559
          %s561 = smul.addr %s33, 16
          %s562 = scalar_lea.hbm %s6, %s561
          %s564 = sshll.u32 %s550, 4
          %s565 = int_to_ptr.vmem [resolvable:$true] %s564
          %567 = dma.vmem_to_hbm [thread:$0]  %s565, 16, %s562, %s548
        $region64: #{tpu_custom_call.1} parent=43 // pred_fallthru
          _
        // Predicated region
        $region65: #{tpu_custom_call.1} parent=43 // pred_check
          %p568 = pneg %p218
        $region66: #{tpu_custom_call.1} parent=43 // pred_check_branch
          %570 = sbr.rel (%p568) target = $region68
        $region67: #{tpu_custom_call.1} parent=43 // pred_region
          %s572 = ssub.s32 16, 16
          %573 = vsyncadd %s552, %s572
          %s574 = smul.addr %s33, 16
          %s575 = scalar_lea.hbm %s7, %s574
          %s577 = sshll.u32 %s554, 4
          %s578 = int_to_ptr.vmem [resolvable:$true] %s577
          %580 = dma.vmem_to_hbm [thread:$0]  %s578, 16, %s575, %s552
        $region68: #{tpu_custom_call.1} parent=43 // pred_fallthru
          _
      $region44: #{tpu_custom_call.1} parent=5 // pred_fallthru
        _
      %p581 = scmp.le.s32.totalorder 2, %s24
      // Predicated region
      $region69: #{tpu_custom_call.1} parent=5 // pred_check
        %p582 = pneg %p581
      $region70: #{tpu_custom_call.1} parent=5 // pred_check_branch
        %584 = sbr.rel (%p582) target = $region72
      $region71: #{tpu_custom_call.1} parent=5 // pred_region
        %s585 = ssub.s32 %s24, 2
        // Predicated region
        $region73: #{tpu_custom_call.1} parent=71 // pred_check
          %p586 = pneg %p198
        $region74: #{tpu_custom_call.1} parent=71 // pred_check_branch
          %588 = sbr.rel (%p586) target = $region76
        $region75: #{tpu_custom_call.1} parent=71 // pred_region
          %s589 = sand.u32 %s183, 1
          %s590 = scalar_lea.sflag [#allocation5], %s589
          %s591 = sand.u32 %s183, 1
          %s592 = scalar_lea.vmem [#allocation8], %s591
          %593 = dma.done %s590, 16
        $region76: #{tpu_custom_call.1} parent=71 // pred_fallthru
          _
        // Predicated region
        $region77: #{tpu_custom_call.1} parent=71 // pred_check
          %p594 = pneg %p224
        $region78: #{tpu_custom_call.1} parent=71 // pred_check_branch
          %596 = sbr.rel (%p594) target = $region80
        $region79: #{tpu_custom_call.1} parent=71 // pred_region
          %s597 = sand.u32 %s209, 1
          %s598 = scalar_lea.sflag [#allocation10], %s597
          %s599 = sand.u32 %s209, 1
          %s600 = scalar_lea.vmem [#allocation9], %s599
          %601 = dma.done %s598, 16
        $region80: #{tpu_custom_call.1} parent=71 // pred_fallthru
          _
      $region72: #{tpu_custom_call.1} parent=5 // pred_fallthru
        _
    $region6: #{tpu_custom_call.1} parent=1 // loop_footer
      %s28 = sadd.s32 1, %s24
    $region7: #{tpu_custom_call.1} parent=1 // loop_footer_branch
      %23 = sbr.rel target = $region3
    $region8: #{tpu_custom_call.1} parent=1 // loop_exit
      _
    %602 = vsyncpa [#allocation4], 1
    %s603 = scalar_lea.sflag [#allocation4], 1
    %604 = vsyncpa %s603, 1
    %605 = vsyncpa [#allocation7], 1
    %606 = vsyncpa [#allocation5], 1
    %s607 = scalar_lea.sflag [#allocation5], 1
    %608 = vsyncpa %s607, 1
    %609 = vsyncpa [#allocation10], 1
    %s610 = scalar_lea.sflag [#allocation10], 1
    %611 = vsyncpa %s610, 1

</llo_original>
